<compile_context>
chip_gen: v7x
topology: tpu7x:2x2x1
jax: 0.10.0
libtpu: 0.0.40
codegen_flags: <defaults>
</compile_context>

<pallas_src>
import functools

import jax
import jax.numpy as jnp
from jax.experimental import pallas as pl
from jax.experimental.pallas import tpu as pltpu

BN_EPS = 1e-5
L2_EPS = 1e-12


# ----------------------------- tiling helpers ---------------------------------


def _round_up(x, m):
    return ((x + m - 1) // m) * m


def _pick_tile(dim, unit, cap):
    """dim is a multiple of `unit`; return the largest multiple of `unit` <= cap dividing dim."""
    best = unit
    t = unit
    lim = min(dim, cap)
    while t <= lim:
        if dim % t == 0:
            best = t
        t += unit
    return best


def _row_tiling(m):
    """Pick a row (M) tile and padded extent: 8-aligned, prefer big MXU-friendly 256 tiles."""
    mp = _round_up(m, 8)
    tm = _pick_tile(mp, 8, 256)
    if tm < 128 and mp > 256:        # pad rows with zeros instead of using tiny tiles
        tm = 256
        mp = _round_up(m, 256)
    return tm, mp


# ----------------------------- Pallas kernels ---------------------------------


def _matmul_kernel(a_ref, b_ref, o_ref, acc_ref):
    # a: (tm, tk) bf16, b: (tk, tn) bf16, o: (tm, tn) f32, acc: (tm, tn) f32 scratch.
    @pl.when(pl.program_id(2) == 0)
    def _():
        acc_ref[...] = jnp.zeros_like(acc_ref)

    acc_ref[...] += jnp.dot(a_ref[...], b_ref[...],
                            preferred_element_type=jnp.float32)

    @pl.when(pl.program_id(2) == pl.num_programs(2) - 1)
    def _():
        o_ref[...] = acc_ref[...]


def _bn_stats_kernel(y_ref, g_ref, b_ref, stat_ref, sum_ref, sq_ref, *, m_real):
    # Accumulate per-channel sum / sum-of-squares across row tiles; on the last tile fold the
    # batch statistics + gamma/beta into a fused per-channel (scale, shift) pair.
    i = pl.program_id(0)

    @pl.when(i == 0)
    def _():
        sum_ref[...] = jnp.zeros_like(sum_ref)
        sq_ref[...] = jnp.zeros_like(sq_ref)

    y = y_ref[...]
    sum_ref[...] += jnp.sum(y, axis=0, keepdims=True)
    sq_ref[...] += jnp.sum(y * y, axis=0, keepdims=True)

    @pl.when(i == pl.num_programs(0) - 1)
    def _():
        inv_m = 1.0 / m_real                                  # padded rows are zero -> exact
        mean = sum_ref[...] * inv_m
        var = jnp.maximum(sq_ref[...] * inv_m - mean * mean, 0.0)
        scale = g_ref[...] * jax.lax.rsqrt(var + BN_EPS)      # rsqrt -> EUP slot
        shift = b_ref[...] - mean * scale
        stat_ref[...] = jnp.concatenate([scale, shift], axis=0)


def _bn_apply_kernel(y_ref, s_ref, *rest, relu, has_residual):
    # y = y*scale + shift (+ residual) (+ ReLU)  -- single fused scale/shift per element.
    if has_residual:
        r_ref, o_ref = rest
    else:
        (o_ref,) = rest
    s = s_ref[...]
    y = y_ref[...] * s[0:1, :] + s[1:2, :]
    if has_residual:
        y = y + r_ref[...]
    if relu:
        y = jnp.maximum(y, 0.0)
    o_ref[...] = y


def _pool_l2norm_kernel(x_ref, o_ref):
    # x: (N, H*W, C) -> global average pool over spatial, then L2-normalize over channels.
    pooled = jnp.mean(x_ref[...], axis=1)                      # (N, C)
    sq = jnp.sum(pooled * pooled, axis=1, keepdims=True)
    o_ref[...] = pooled * jax.lax.rsqrt(sq + L2_EPS)


# ----------------------------- JAX glue (im2col etc.) -------------------------


def _im2col(x, kh, kw, stride, padding):
    """x: (N, H, W, C) NHWC -> patches (N*OH*OW, kh*kw*C), tap-major / channel-minor."""
    n, h, w, c = x.shape
    if padding:
        x = jnp.pad(x, ((0, 0), (padding, padding), (padding, padding), (0, 0)))
    hp, wp = h + 2 * padding, w + 2 * padding
    oh = (hp - kh) // stride + 1
    ow = (wp - kw) // stride + 1
    cols = []
    for i in range(kh):
        for j in range(kw):
            cols.append(x[:, i:i + stride * oh:stride, j:j + stride * ow:stride, :])
    patches = jnp.stack(cols, axis=3)                          # (N, OH, OW, kh*kw, C)
    return patches.reshape(n * oh * ow, kh * kw * c), (n, oh, ow)


def conv_bn(x, cw, stride, padding, relu, residual=None):
    """Conv (im2col + tiled MXU matmul) + train-mode BN + optional fused residual add + ReLU.

    x: (N, H, W, Cin) NHWC. cw: packed conv params from _pack_conv. Returns NHWC fp32.
    """
    kh, kw, cout = cw["kh"], cw["kw"], cw["cout"]
    k, kp, cp, tk, tn = cw["k"], cw["kp"], cw["cp"], cw["tk"], cw["tn"]

    patches, (n, oh, ow) = _im2col(x, kh, kw, stride, padding)
    m = patches.shape[0]
    tm, mp = _row_tiling(m)

    # TODO(synk): the kh*kw-times-expanded im2col slab is still materialized in HBM (in bf16);
    # an in-kernel shifted-window accumulation over a tap grid axis would remove that traffic.
    a = patches.astype(jnp.bfloat16)
    if mp != m or kp != k:
        a = jnp.pad(a, ((0, mp - m), (0, kp - k)))

    # ---- 1) tiled matmul: y = patches @ w  (bf16 operands, f32 accumulation) ----
    y = pl.pallas_call(
        _matmul_kernel,
        grid=(mp // tm, cp // tn, kp // tk),
        in_specs=[pl.BlockSpec((tm, tk), lambda i, j, kt: (i, kt)),
                  pl.BlockSpec((tk, tn), lambda i, j, kt: (kt, j))],
        out_specs=pl.BlockSpec((tm, tn), lambda i, j, kt: (i, j)),
        out_shape=jax.ShapeDtypeStruct((mp, cp), jnp.float32),
        scratch_shapes=[pltpu.VMEM((tm, tn), jnp.float32)],
        compiler_params=pltpu.CompilerParams(
            dimension_semantics=("parallel", "parallel", "arbitrary")),
    )(a, cw["w"])

    # ---- 2) per-channel batch statistics -> fused (scale, shift) (one cheap pass over y) ----
    stats = pl.pallas_call(
        functools.partial(_bn_stats_kernel, m_real=float(m)),
        grid=(mp // tm,),
        in_specs=[pl.BlockSpec((tm, cp), lambda i: (i, 0)),
                  pl.BlockSpec((1, cp), lambda i: (0, 0)),
                  pl.BlockSpec((1, cp), lambda i: (0, 0))],
        out_specs=pl.BlockSpec((2, cp), lambda i: (0, 0)),
        out_shape=jax.ShapeDtypeStruct((2, cp), jnp.float32),
        scratch_shapes=[pltpu.VMEM((1, cp), jnp.float32),
                        pltpu.VMEM((1, cp), jnp.float32)],
        compiler_params=pltpu.CompilerParams(dimension_semantics=("arbitrary",)),
    )(y, cw["g"], cw["b"])

    # ---- 3) normalize + affine (+ fused residual add) (+ ReLU), tiled over rows ----
    in_specs = [pl.BlockSpec((tm, cp), lambda i: (i, 0)),
                pl.BlockSpec((2, cp), lambda i: (0, 0))]
    operands = [y, stats]
    if residual is not None:
        r = residual.reshape(m, cout)
        if mp != m or cp != cout:
            r = jnp.pad(r, ((0, mp - m), (0, cp - cout)))
        in_specs.append(pl.BlockSpec((tm, cp), lambda i: (i, 0)))
        operands.append(r)

    out = pl.pallas_call(
        functools.partial(_bn_apply_kernel, relu=relu,
                          has_residual=residual is not None),
        grid=(mp // tm,),
        in_specs=in_specs,
        out_specs=pl.BlockSpec((tm, cp), lambda i: (i, 0)),
        out_shape=jax.ShapeDtypeStruct((mp, cp), jnp.float32),
        compiler_params=pltpu.CompilerParams(dimension_semantics=("parallel",)),
    )(*operands)

    return out[:m, :cout].reshape(n, oh, ow, cout)


def basic_block(x, bp):
    """torchvision BasicBlock: conv-bn-relu, conv-bn, (+ downsample), residual add, relu.
    The residual add + final ReLU are fused into conv2's BN epilogue kernel."""
    stride = bp["stride"]
    out = conv_bn(x, bp["conv1"], stride, 1, relu=True)
    if "down" in bp:
        identity = conv_bn(x, bp["down"], stride, 0, relu=False)
    else:
        identity = x
    return conv_bn(out, bp["conv2"], 1, 1, relu=True, residual=identity)


# ----------------------------- Parameters --------------------------------------


def init_params(key):
    """PyTorch-layout parameters (deterministic)."""
    def conv_w(k, oc, ic, kh, kw):
        fan_in = ic * kh * kw
        return jax.random.normal(k, (oc, ic, kh, kw), jnp.float32) * jnp.sqrt(2.0 / fan_in)

    keys = iter(jax.random.split(key, 64))
    params = {
        # encoder.conv1 overridden: Conv2d(3, 64, kernel_size=3, stride=1, bias=False)
        "conv1_w": conv_w(next(keys), 64, 3, 3, 3),
        "bn1_g": jnp.ones((64,), jnp.float32),
        "bn1_b": jnp.zeros((64,), jnp.float32),
    }
    stage_cfg = [(64, 1), (128, 2), (256, 2), (512, 2)]  # resnet18
    in_c = 64
    layers = []
    for c, stride in stage_cfg:
        blocks = []
        for bidx in range(2):
            s = stride if bidx == 0 else 1
            bp = {
                "stride": s,
                "conv1_w": conv_w(next(keys), c, in_c, 3, 3),
                "bn1_g": jnp.ones((c,), jnp.float32),
                "bn1_b": jnp.zeros((c,), jnp.float32),
                "conv2_w": conv_w(next(keys), c, c, 3, 3),
                "bn2_g": jnp.ones((c,), jnp.float32),
                "bn2_b": jnp.zeros((c,), jnp.float32),
            }
            if s != 1 or in_c != c:
                bp["down_w"] = conv_w(next(keys), c, in_c, 1, 1)
                bp["down_g"] = jnp.ones((c,), jnp.float32)
                bp["down_b"] = jnp.zeros((c,), jnp.float32)
            blocks.append(bp)
            in_c = c
        layers.append(blocks)
    params["layers"] = layers
    return params


def _pack_conv(w, gamma, beta):
    """One-time prep: (OC,IC,KH,KW) -> padded (Kp, Cp) bf16 weights + padded gamma/beta + tiling."""
    oc, ic, kh, kw = w.shape
    k = kh * kw * ic
    kp = _round_up(k, 128)
    cp = _round_up(oc, 128)
    tk = _pick_tile(kp, 128, 1024)
    tn = _pick_tile(cp, 128, 256)
    w2 = jnp.transpose(w, (2, 3, 1, 0)).reshape(k, oc)          # tap-major, matches im2col order
    w2 = jnp.pad(w2, ((0, kp - k), (0, cp - oc))).astype(jnp.bfloat16)
    g = jnp.pad(jnp.asarray(gamma, jnp.float32).reshape(1, oc), ((0, 0), (0, cp - oc)))
    b = jnp.pad(jnp.asarray(beta, jnp.float32).reshape(1, oc), ((0, 0), (0, cp - oc)))
    return {"w": w2, "g": g, "b": b, "kh": kh, "kw": kw, "cin": ic, "cout": oc,
            "k": k, "kp": kp, "cp": cp, "tk": tk, "tn": tn}


def preprocess_params(params):
    packed = {"stem": _pack_conv(params["conv1_w"], params["bn1_g"], params["bn1_b"]),
              "layers": []}
    for blocks in params["layers"]:
        pblocks = []
        for bp in blocks:
            pb = {"stride": bp["stride"],
                  "conv1": _pack_conv(bp["conv1_w"], bp["bn1_g"], bp["bn1_b"]),
                  "conv2": _pack_conv(bp["conv2_w"], bp["bn2_g"], bp["bn2_b"])}
            if "down_w" in bp:
                pb["down"] = _pack_conv(bp["down_w"], bp["down_g"], bp["down_b"])
            pblocks.append(pb)
        packed["layers"].append(pblocks)
    return packed


# ----------------------------- Forward -----------------------------------------


def resnet_cifar_forward(packed, x_nchw):
    """Matches ResNetCifar.forward: encoder(x) -> L2 normalize over dim=1. Returns (N, 512)."""
    x = jnp.transpose(x_nchw, (0, 2, 3, 1)).astype(jnp.float32)   # NCHW -> NHWC
    # conv1 + bn1 + relu  (maxpool is Identity; Conv2d default padding=0 per the spec)
    x = conv_bn(x, packed["stem"], 1, 0, relu=True)
    # layer1..layer4
    for blocks in packed["layers"]:
        for bp in blocks:
            x = basic_block(x, bp)
    # adaptive avg pool (1,1) + flatten (fc is Identity) + Normalize(power=2) over dim=1
    n, h, w, c = x.shape
    flat = x.reshape(n, h * w, c)
    out = pl.pallas_call(
        _pool_l2norm_kernel,
        grid=(1,),
        in_specs=[pl.BlockSpec((n, h * w, c), lambda i: (0, 0, 0))],
        out_specs=pl.BlockSpec((n, c), lambda i: (0, 0)),
        out_shape=jax.ShapeDtypeStruct((n, c), jnp.float32),
    )(flat)
    return out


# ----------------------------- Main ---------------------------------------------


if __name__ == "__main__":
    key = jax.random.PRNGKey(0)
    pkey, xkey = jax.random.split(key)
    params = init_params(pkey)
    packed = preprocess_params(params)

    # Small CIFAR-like input: batch=2, channels=3 (required by conv1), spatial=16.
    x = jax.random.normal(xkey, (2, 3, 16, 16), jnp.float32)

    out = resnet_cifar_forward(packed, x)
    out = jax.block_until_ready(out)

    assert out.shape == (2, 512), out.shape
    assert bool(jnp.all(jnp.isfinite(out)))
    norms = jnp.sqrt(jnp.sum(out * out, axis=1))
    assert bool(jnp.all(jnp.abs(norms - 1.0) < 1e-3)), norms
    print("KERNEL_OK")
</pallas_src>

<mosaic_0001>
module attributes {stable_mosaic.version = 11 : i64} {
  func.func @_matmul_kernel(%arg0: i32, %arg1: i32, %arg2: i32, %arg3: memref<256x128xbf16, #tpu.memory_space<vmem>>, %arg4: memref<128x128xbf16, #tpu.memory_space<vmem>>, %arg5: memref<256x128xf32, #tpu.memory_space<vmem>>, %arg6: memref<256x128xf32, #tpu.memory_space<vmem>>) attributes {dimension_semantics = [#tpu.dimension_semantics<parallel>, #tpu.dimension_semantics<parallel>, #tpu.dimension_semantics<arbitrary>], iteration_bounds = array<i64: 2, 1, 1>, scalar_prefetch = 0 : i64, scratch_operands = 1 : i64, tpu.core_type = #tpu.core_type<tc>, window_params = [{transform_indices = @transform_0, window_bounds = array<i64: 256, 128>}, {transform_indices = @transform_1, window_bounds = array<i64: 128, 128>}, {transform_indices = @transform_2, window_bounds = array<i64: 256, 128>}]} {
    %c0_i32 = arith.constant 0 : i32
    %0 = arith.cmpi eq, %arg2, %c0_i32 : i32
    %1 = arith.extui %0 : i1 to i32
    %c0_i32_0 = arith.constant 0 : i32
    %2 = arith.cmpi ne, %1, %c0_i32_0 : i32
    scf.if %2 {
      %cst_10 = arith.constant 0.000000e+00 : f32
      %12 = vector.broadcast %cst_10 : f32 to vector<256x128xf32>
      %c0_11 = arith.constant 0 : index
      %c0_12 = arith.constant 0 : index
      %13 = vector.load %arg6[%c0_11, %c0_12] : memref<256x128xf32, #tpu.memory_space<vmem>>, vector<256x128xf32>
      tpu.vector_store %arg6[%c0_11, %c0_12], %12 {strides = array<i32>} : memref<256x128xf32, #tpu.memory_space<vmem>>, vector<256x128xf32>,
    } else {
    }
    %c0 = arith.constant 0 : index
    %c0_1 = arith.constant 0 : index
    %3 = vector.load %arg6[%c0, %c0_1] : memref<256x128xf32, #tpu.memory_space<vmem>>, vector<256x128xf32>
    %c0_2 = arith.constant 0 : index
    %c0_3 = arith.constant 0 : index
    %4 = vector.load %arg3[%c0_2, %c0_3] : memref<256x128xbf16, #tpu.memory_space<vmem>>, vector<256x128xbf16>
    %c0_4 = arith.constant 0 : index
    %c0_5 = arith.constant 0 : index
    %5 = vector.load %arg4[%c0_4, %c0_5] : memref<128x128xbf16, #tpu.memory_space<vmem>>, vector<128x128xbf16>
    %cst = arith.constant dense<0.000000e+00> : vector<256x128xf32>
    %6 = tpu.matmul %4, %5, %cst {dimension_numbers = #tpu.dot_dimension_numbers<[1], [0], [0], [1], [0, 0, 1, 1], [], []>} : vector<256x128xbf16>, vector<128x128xbf16>, vector<256x128xf32> -> vector<256x128xf32>
    %7 = arith.addf %3, %6 : vector<256x128xf32>
    %c0_6 = arith.constant 0 : index
    %c0_7 = arith.constant 0 : index
    %8 = vector.load %arg6[%c0_6, %c0_7] : memref<256x128xf32, #tpu.memory_space<vmem>>, vector<256x128xf32>
    tpu.vector_store %arg6[%c0_6, %c0_7], %7 {strides = array<i32>} : memref<256x128xf32, #tpu.memory_space<vmem>>, vector<256x128xf32>,
    %c0_i32_8 = arith.constant 0 : i32
    %9 = arith.cmpi eq, %arg2, %c0_i32_8 : i32
    %10 = arith.extui %9 : i1 to i32
    %c0_i32_9 = arith.constant 0 : i32
    %11 = arith.cmpi ne, %10, %c0_i32_9 : i32
    scf.if %11 {
      %c0_10 = arith.constant 0 : index
      %c0_11 = arith.constant 0 : index
      %12 = vector.load %arg6[%c0_10, %c0_11] : memref<256x128xf32, #tpu.memory_space<vmem>>, vector<256x128xf32>
      %c0_12 = arith.constant 0 : index
      %c0_13 = arith.constant 0 : index
      %13 = vector.load %arg5[%c0_12, %c0_13] : memref<256x128xf32, #tpu.memory_space<vmem>>, vector<256x128xf32>
      tpu.vector_store %arg5[%c0_12, %c0_13], %12 {strides = array<i32>} : memref<256x128xf32, #tpu.memory_space<vmem>>, vector<256x128xf32>,
    } else {
    }
    return
  }
  func.func @transform_0(%arg0: i32, %arg1: i32, %arg2: i32) -> (i32, i32) {
    %c0_i32 = arith.constant 0 : i32
    return %arg0, %arg2 : i32, i32
  }
  func.func @transform_1(%arg0: i32, %arg1: i32, %arg2: i32) -> (i32, i32) {
    %c0_i32 = arith.constant 0 : i32
    return %arg2, %arg1 : i32, i32
  }
  func.func @transform_2(%arg0: i32, %arg1: i32, %arg2: i32) -> (i32, i32) {
    %c0_i32 = arith.constant 0 : i32
    return %arg0, %arg1 : i32, i32
  }
}

</mosaic_0001>

<llo_original>
// kernel: tpu_custom_call.1
$region0: #{tpu_custom_call.1}
  #allocation0 [shape = 'u32[]', space=smem, size = 0x4, offset = 0x4, fixed_abs, tag = 'smem constant byte address 0x4 - core index']
  #allocation1 [shape = 'u32[144,128]{1,0:T(1,128)}', space=vmem, size = 0x12000, scoped, tag = 'internal scratch']
  #allocation2 [shape = 'f32[256,128]{1,0:T(8,128)}', space=vmem, size = 0x20000, scoped, tag = 'scratch operand']
  %s0 = inlined_call_operand.hbm [shape: bf16[512,128], index: 0, kind: input, shape index: {}]
  %s1 = inlined_call_operand.hbm [shape: bf16[128,128], index: 1, kind: input, shape index: {}]
  %s2 = inlined_call_operand.hbm [shape: f32[512,128], index: 2, kind: output, shape index: {}]
  %s3 = sld [smem:[#allocation0]]
  $region57: #{tpu_custom_call.1} parent=0
    _
  %s5 = ssub.s32 1, %s3
  %s6 = scalar_select 0, %s5, %s3
  $region1: #{tpu_custom_call.1} parent=0
    #allocation3 [shape = 'u8[131072]{0}', space=vmem, size = 0x20000, scoped, tag = 'input window, operand 0']
    #allocation4 [shape = 's32[2]{0}', space=sflag, size = 0x8, scoped, tag = 'scoped memory for tpu_custom_call.1']
    #allocation5 [shape = 's32[2]{0}', space=sflag, size = 0x8, scoped, tag = 'scoped memory for tpu_custom_call.1']
    #allocation6 [shape = 'u8[32768]{0}', space=vmem, size = 0x8000, scoped, tag = 'input window, operand 1, single buffered']
    #allocation7 [shape = 's32[1]{0}', space=sflag, size = 0x4, scoped, tag = 'scoped memory for tpu_custom_call.1']
    #allocation8 [shape = 'u8[262144]{0}', space=vmem, size = 0x40000, scoped, tag = 'output window, operand 0']
    %7 = vsyncpa [#allocation4], 0
    %s8 = scalar_lea.sflag [#allocation4], 1
    %9 = vsyncpa %s8, 0
    %10 = vsyncpa [#allocation7], 0
    %11 = vsyncpa [#allocation5], 0
    %s12 = scalar_lea.sflag [#allocation5], 1
    %13 = vsyncpa %s12, 0
    loop: start=0, step=1, limit=4
    $region2: #{tpu_custom_call.1} parent=1 // loop_pre_header
      _
    $region3: #{tpu_custom_call.1} parent=1 // loop_header
      %s15 = sphi 0, %s19
      %p16 = scmp.ge.s32.totalorder %s15, 4
      %s22 = sphi 0, %s41
      %s23 = sphi 0, %s37
      %s24 = sphi 0, %s33
      %s25 = sphi 0, %s22
      %s26 = sphi 0, %s23
      %s27 = sphi 0, %s24
      %s28 = sphi 0, %s25
      %s29 = sphi 0, %s26
      %s30 = sphi 0, %s27
      %s46 = sphi 0, %s48
      %s49 = sphi 0, %s46
      %s50 = sphi 0, %s49
      %s66 = sphi 0, %s50
      %s74 = sphi 0, %s76
      %s77 = sphi 0, %s74
      %s78 = sphi 0, %s77
      %s94 = sphi 0, %s78
      %s102 = sphi 0, %s104
      %s105 = sphi 0, %s102
      %s106 = sphi 0, %s105
      %s122 = sphi 0, %s106
    $region4: #{tpu_custom_call.1} parent=1 // loop_header_branch
      %18 = sbr.rel (%p16) target = $region8
    $region5: #{tpu_custom_call.1} parent=1 // loop_body
      %s20 = ssub.s32 %s15, 1
      %s21 = ssub.s32 %s15, 2
      %s31 = sadd.s32 1, %s24
      %p32 = scmp.ge.s32.totalorder %s31, 1
      %s33 = scalar_select %p32, 0, %s31
      %s34 = sadd.s32 1, %s23
      %s35 = scalar_select %p32, %s34, %s23
      %p36 = scmp.ge.s32.totalorder %s35, 1
      %s37 = scalar_select %p36, 0, %s35
      %s38 = sadd.s32 1, %s22
      %s39 = scalar_select %p36, %s38, %s22
      %p40 = scmp.ge.s32.totalorder %s39, 2
      %s41 = scalar_select %p40, 0, %s39
      %s42 = ssub.s32 %s22, %s41
      %s43 = ssub.s32 %s24, %s33
      %s44 = sor.u32 %s42, %s43
      %p45 = scmp.eq.s32.totalorder %s44, 0
      %s47 = sadd.s32 %s46, 1
      %s48 = scalar_select %p45, %s46, %s47
      %p51 = pneg %p45
      %p52 = scmp.eq.s32.totalorder %s15, 1
      %p53 = por %p51, %p52
      %p54 = scmp.ne.s32.totalorder %s46, %s49
      %p55 = scmp.eq.s32.totalorder %s15, 0
      %p56 = por %p54, %p55
      %p57 = scmp.ne.s32.totalorder %s46, %s49
      %p58 = scmp.eq.s32.totalorder %s20, 1
      %p59 = por %p57, %p58
      %p60 = scmp.ne.s32.totalorder %s49, %s50
      %p61 = scmp.eq.s32.totalorder %s20, 0
      %p62 = por %p60, %p61
      %p63 = scmp.ne.s32.totalorder %s49, %s50
      %p64 = scmp.eq.s32.totalorder %s21, 1
      %p65 = por %p63, %p64
      %p67 = scmp.ne.s32.totalorder %s50, %s66
      %p68 = scmp.eq.s32.totalorder %s21, 0
      %p69 = por %p67, %p68
      %s70 = ssub.s32 %s24, %s33
      %s71 = ssub.s32 %s23, %s37
      %s72 = sor.u32 %s70, %s71
      %p73 = scmp.eq.s32.totalorder %s72, 0
      %s75 = sadd.s32 %s74, 1
      %s76 = scalar_select %p73, %s74, %s75
      %p79 = pneg %p73
      %p80 = scmp.eq.s32.totalorder %s15, 1
      %p81 = por %p79, %p80
      %p82 = scmp.ne.s32.totalorder %s74, %s77
      %p83 = scmp.eq.s32.totalorder %s15, 0
      %p84 = por %p82, %p83
      %p85 = scmp.ne.s32.totalorder %s74, %s77
      %p86 = scmp.eq.s32.totalorder %s20, 1
      %p87 = por %p85, %p86
      %p88 = scmp.ne.s32.totalorder %s77, %s78
      %p89 = scmp.eq.s32.totalorder %s20, 0
      %p90 = por %p88, %p89
      %p91 = scmp.ne.s32.totalorder %s77, %s78
      %p92 = scmp.eq.s32.totalorder %s21, 1
      %p93 = por %p91, %p92
      %p95 = scmp.ne.s32.totalorder %s78, %s94
      %p96 = scmp.eq.s32.totalorder %s21, 0
      %p97 = por %p95, %p96
      %s98 = ssub.s32 %s22, %s41
      %s99 = ssub.s32 %s23, %s37
      %s100 = sor.u32 %s98, %s99
      %p101 = scmp.eq.s32.totalorder %s100, 0
      %s103 = sadd.s32 %s102, 1
      %s104 = scalar_select %p101, %s102, %s103
      %p107 = pneg %p101
      %p108 = scmp.eq.s32.totalorder %s15, 1
      %p109 = por %p107, %p108
      %p110 = scmp.ne.s32.totalorder %s102, %s105
      %p111 = scmp.eq.s32.totalorder %s15, 0
      %p112 = por %p110, %p111
      %p113 = scmp.ne.s32.totalorder %s102, %s105
      %p114 = scmp.eq.s32.totalorder %s20, 1
      %p115 = por %p113, %p114
      %p116 = scmp.ne.s32.totalorder %s105, %s106
      %p117 = scmp.eq.s32.totalorder %s20, 0
      %p118 = por %p116, %p117
      %p119 = scmp.ne.s32.totalorder %s105, %s106
      %p120 = scmp.eq.s32.totalorder %s21, 1
      %p121 = por %p119, %p120
      %p123 = scmp.ne.s32.totalorder %s106, %s122
      %p124 = scmp.eq.s32.totalorder %s21, 0
      %p125 = por %p123, %p124
      %p126 = scmp.le.s32.totalorder 1, %s15
      %p127 = scmp.lt.s32.totalorder %s15, 3
      %p128 = pnand %p126, %p127
      %p129 = pneg %p128
      // Predicated region
      $region9: #{tpu_custom_call.1} parent=5 // pred_check
        _
      $region10: #{tpu_custom_call.1} parent=5 // pred_check_branch
        %131 = sbr.rel (%p128) target = $region12
      $region11: #{tpu_custom_call.1} parent=5 // pred_region
        %s132 = ssub.s32 %s15, 1
        // Predicated region
        $region13: #{tpu_custom_call.1} parent=11 // pred_check
          %p133 = pneg %p90
        $region14: #{tpu_custom_call.1} parent=11 // pred_check_branch
          %135 = sbr.rel (%p133) target = $region16
        $region15: #{tpu_custom_call.1} parent=11 // pred_region
          %s136 = smul.u32 16, %s27
          %s138 = ssub.s32 1024, 1024
          %139 = vsyncadd [#allocation7], %s138
          %s140 = sadd.s32 %s26, %s136
          %s141 = smul.addr %s140, 64
          %s142 = scalar_lea.hbm %s1, %s141
          %s143 = sshll.u32 [#allocation6], 4
          %s144 = int_to_ptr.vmem [resolvable:$true] %s143
          %149 = dma.hbm_to_vmem [thread:$0]  %s142, 1024, %s144, [#allocation7], 64, 64, 4
        $region16: #{tpu_custom_call.1} parent=11 // pred_fallthru
          _
      $region12: #{tpu_custom_call.1} parent=5 // pred_fallthru
        _
      %p150 = scmp.lt.s32.totalorder %s15, 2
      // Predicated region
      $region17: #{tpu_custom_call.1} parent=5 // pred_check
        %p151 = pneg %p150
      $region18: #{tpu_custom_call.1} parent=5 // pred_check_branch
        %153 = sbr.rel (%p151) target = $region20
      $region19: #{tpu_custom_call.1} parent=5 // pred_region
        // Predicated region
        $region21: #{tpu_custom_call.1} parent=19 // pred_check
          %p154 = pneg %p56
        $region22: #{tpu_custom_call.1} parent=19 // pred_check_branch
          %156 = sbr.rel (%p154) target = $region24
        $region23: #{tpu_custom_call.1} parent=19 // pred_region
          %s157 = sand.u32 %s46, 1
          %s158 = scalar_lea.sflag [#allocation4], %s157
          %s159 = sand.u32 %s46, 1
          %s160 = smul.addr %s159, 128
          %s161 = scalar_lea.vmem [#allocation3], %s160
          %s162 = smul.u32 32, %s22
          %s164 = ssub.s32 2048, 2048
          %165 = vsyncadd %s158, %s164
          %s166 = sadd.s32 %s24, %s162
          %s167 = smul.addr %s166, 64
          %s168 = scalar_lea.hbm %s0, %s167
          %s169 = sshll.u32 %s161, 4
          %s170 = int_to_ptr.vmem [resolvable:$true] %s169
          %175 = dma.hbm_to_vmem [thread:$0]  %s168, 2048, %s170, %s158, 64, 64, 4
        $region24: #{tpu_custom_call.1} parent=19 // pred_fallthru
          _
      $region20: #{tpu_custom_call.1} parent=5 // pred_fallthru
        _
      %p176 = scmp.le.s32.totalorder 1, %s15
      %p177 = scmp.lt.s32.totalorder %s15, 3
      %p178 = pnand %p176, %p177
      %p179 = pneg %p178
      // Predicated region
      $region25: #{tpu_custom_call.1} parent=5 // pred_check
        _
      $region26: #{tpu_custom_call.1} parent=5 // pred_check_branch
        %181 = sbr.rel (%p178) target = $region28
      $region27: #{tpu_custom_call.1} parent=5 // pred_region
        %s182 = ssub.s32 %s15, 1
        %s183 = sand.u32 %s49, 1
        %s184 = scalar_lea.sflag [#allocation4], %s183
        %s185 = sand.u32 %s49, 1
        %s186 = smul.addr %s185, 128
        %s187 = scalar_lea.vmem [#allocation3], %s186
        // Predicated region
        $region29: #{tpu_custom_call.1} parent=27 // pred_check
          %p188 = pneg %p62
        $region30: #{tpu_custom_call.1} parent=27 // pred_check_branch
          %190 = sbr.rel (%p188) target = $region32
        $region31: #{tpu_custom_call.1} parent=27 // pred_region
          %191 = dma.done %s184, 2048
        $region32: #{tpu_custom_call.1} parent=27 // pred_fallthru
          _
        // Predicated region
        $region33: #{tpu_custom_call.1} parent=27 // pred_check
          %p192 = pneg %p90
        $region34: #{tpu_custom_call.1} parent=27 // pred_check_branch
          %194 = sbr.rel (%p192) target = $region36
        $region35: #{tpu_custom_call.1} parent=27 // pred_region
          %195 = dma.done [#allocation7], 1024
        $region36: #{tpu_custom_call.1} parent=27 // pred_fallthru
          _
        %s196 = sand.u32 %s49, 1
        %s197 = scalar_lea.sflag [#allocation4], %s196
        %s198 = sand.u32 %s49, 1
        %s199 = smul.addr %s198, 128
        %s200 = scalar_lea.vmem [#allocation3], %s199
        %p201 = pneg %p62
        %p202 = pneg %p59
        %p203 = pneg %p90
        %p204 = pneg %p87
        %p205 = pneg %p118
        %p206 = pneg %p115
        %s207 = sand.u32 %s105, 1
        %s208 = scalar_lea.sflag [#allocation5], %s207
        %s209 = sand.u32 %s105, 1
        %s210 = smul.addr %s209, 256
        %s211 = scalar_lea.vmem [#allocation8], %s210
        %s212 = smul.u32 32, %s25
        %s213 = smul.u32 16, %s27
        %s214 = smul.u32 32, %s25
        %p216 = scmp.eq.s32.totalorder %s27, 0
        // Predicated region
        $region37: #{tpu_custom_call.1} parent=27 // pred_check
          %p217 = pneg %p216
        $region38: #{tpu_custom_call.1} parent=27 // pred_check_branch
          %219 = sbr.rel (%p217) target = $region40
        $region39: #{tpu_custom_call.1} parent=27 // pred_region
          %220 = vst [vmem:[#allocation2] sm:$0xff] 0.0
          %221 = vst [vmem:[#allocation2 + $0x8] sm:$0xff] 0.0
          %222 = vst [vmem:[#allocation2 + $0x10] sm:$0xff] 0.0
          %223 = vst [vmem:[#allocation2 + $0x18] sm:$0xff] 0.0
          %224 = vst [vmem:[#allocation2 + $0x20] sm:$0xff] 0.0
          %225 = vst [vmem:[#allocation2 + $0x28] sm:$0xff] 0.0
          %226 = vst [vmem:[#allocation2 + $0x30] sm:$0xff] 0.0
          %227 = vst [vmem:[#allocation2 + $0x38] sm:$0xff] 0.0
          %228 = vst [vmem:[#allocation2 + $0x40] sm:$0xff] 0.0
          %229 = vst [vmem:[#allocation2 + $0x48] sm:$0xff] 0.0
          %230 = vst [vmem:[#allocation2 + $0x50] sm:$0xff] 0.0
          %231 = vst [vmem:[#allocation2 + $0x58] sm:$0xff] 0.0
          %232 = vst [vmem:[#allocation2 + $0x60] sm:$0xff] 0.0
          %233 = vst [vmem:[#allocation2 + $0x68] sm:$0xff] 0.0
          %234 = vst [vmem:[#allocation2 + $0x70] sm:$0xff] 0.0
          %235 = vst [vmem:[#allocation2 + $0x78] sm:$0xff] 0.0
          %236 = vst [vmem:[#allocation2 + $0x80] sm:$0xff] 0.0
          %237 = vst [vmem:[#allocation2 + $0x88] sm:$0xff] 0.0
          %238 = vst [vmem:[#allocation2 + $0x90] sm:$0xff] 0.0
          %239 = vst [vmem:[#allocation2 + $0x98] sm:$0xff] 0.0
          %240 = vst [vmem:[#allocation2 + $0xa0] sm:$0xff] 0.0
          %241 = vst [vmem:[#allocation2 + $0xa8] sm:$0xff] 0.0
          %242 = vst [vmem:[#allocation2 + $0xb0] sm:$0xff] 0.0
          %243 = vst [vmem:[#allocation2 + $0xb8] sm:$0xff] 0.0
          %244 = vst [vmem:[#allocation2 + $0xc0] sm:$0xff] 0.0
          %245 = vst [vmem:[#allocation2 + $0xc8] sm:$0xff] 0.0
          %246 = vst [vmem:[#allocation2 + $0xd0] sm:$0xff] 0.0
          %247 = vst [vmem:[#allocation2 + $0xd8] sm:$0xff] 0.0
          %248 = vst [vmem:[#allocation2 + $0xe0] sm:$0xff] 0.0
          %249 = vst [vmem:[#allocation2 + $0xe8] sm:$0xff] 0.0
          %250 = vst [vmem:[#allocation2 + $0xf0] sm:$0xff] 0.0
          %251 = vst [vmem:[#allocation2 + $0xf8] sm:$0xff] 0.0
        $region40: #{tpu_custom_call.1} parent=27 // pred_fallthru
          _
        %v252 = vld [vmem:[#allocation2] sm:$0xff]
        %v253 = vld [vmem:[#allocation2 + $0x8] sm:$0xff]
        %v254 = vld [vmem:[#allocation2 + $0x10] sm:$0xff]
        %v255 = vld [vmem:[#allocation2 + $0x18] sm:$0xff]
        %v256 = vld [vmem:[#allocation2 + $0x20] sm:$0xff]
        %v257 = vld [vmem:[#allocation2 + $0x28] sm:$0xff]
        %v258 = vld [vmem:[#allocation2 + $0x30] sm:$0xff]
        %v259 = vld [vmem:[#allocation2 + $0x38] sm:$0xff]
        %v260 = vld [vmem:[#allocation2 + $0x40] sm:$0xff]
        %v261 = vld [vmem:[#allocation2 + $0x48] sm:$0xff]
        %v262 = vld [vmem:[#allocation2 + $0x50] sm:$0xff]
        %v263 = vld [vmem:[#allocation2 + $0x58] sm:$0xff]
        %v264 = vld [vmem:[#allocation2 + $0x60] sm:$0xff]
        %v265 = vld [vmem:[#allocation2 + $0x68] sm:$0xff]
        %v266 = vld [vmem:[#allocation2 + $0x70] sm:$0xff]
        %v267 = vld [vmem:[#allocation2 + $0x78] sm:$0xff]
        %v268 = vld [vmem:[#allocation2 + $0x80] sm:$0xff]
        %v269 = vld [vmem:[#allocation2 + $0x88] sm:$0xff]
        %v270 = vld [vmem:[#allocation2 + $0x90] sm:$0xff]
        %v271 = vld [vmem:[#allocation2 + $0x98] sm:$0xff]
        %v272 = vld [vmem:[#allocation2 + $0xa0] sm:$0xff]
        %v273 = vld [vmem:[#allocation2 + $0xa8] sm:$0xff]
        %v274 = vld [vmem:[#allocation2 + $0xb0] sm:$0xff]
        %v275 = vld [vmem:[#allocation2 + $0xb8] sm:$0xff]
        %v276 = vld [vmem:[#allocation2 + $0xc0] sm:$0xff]
        %v277 = vld [vmem:[#allocation2 + $0xc8] sm:$0xff]
        %v278 = vld [vmem:[#allocation2 + $0xd0] sm:$0xff]
        %v279 = vld [vmem:[#allocation2 + $0xd8] sm:$0xff]
        %v280 = vld [vmem:[#allocation2 + $0xe0] sm:$0xff]
        %v281 = vld [vmem:[#allocation2 + $0xe8] sm:$0xff]
        %v282 = vld [vmem:[#allocation2 + $0xf0] sm:$0xff]
        %v283 = vld [vmem:[#allocation2 + $0xf8] sm:$0xff]
        %v284 = vld [vmem:[%s187] sm:$0xf]
        %v285 = vld [vmem:[%s187 + $0x4] sm:$0xf]
        %v286 = vld [vmem:[%s187 + $0x8] sm:$0xf]
        %v287 = vld [vmem:[%s187 + $0xc] sm:$0xf]
        %v288 = vld [vmem:[%s187 + $0x10] sm:$0xf]
        %v289 = vld [vmem:[%s187 + $0x14] sm:$0xf]
        %v290 = vld [vmem:[%s187 + $0x18] sm:$0xf]
        %v291 = vld [vmem:[%s187 + $0x1c] sm:$0xf]
        %v292 = vld [vmem:[%s187 + $0x20] sm:$0xf]
        %v293 = vld [vmem:[%s187 + $0x24] sm:$0xf]
        %v294 = vld [vmem:[%s187 + $0x28] sm:$0xf]
        %v295 = vld [vmem:[%s187 + $0x2c] sm:$0xf]
        %v296 = vld [vmem:[%s187 + $0x30] sm:$0xf]
        %v297 = vld [vmem:[%s187 + $0x34] sm:$0xf]
        %v298 = vld [vmem:[%s187 + $0x38] sm:$0xf]
        %v299 = vld [vmem:[%s187 + $0x3c] sm:$0xf]
        %v300 = vld [vmem:[%s187 + $0x40] sm:$0xf]
        %v301 = vld [vmem:[%s187 + $0x44] sm:$0xf]
        %v302 = vld [vmem:[%s187 + $0x48] sm:$0xf]
        %v303 = vld [vmem:[%s187 + $0x4c] sm:$0xf]
        %v304 = vld [vmem:[%s187 + $0x50] sm:$0xf]
        %v305 = vld [vmem:[%s187 + $0x54] sm:$0xf]
        %v306 = vld [vmem:[%s187 + $0x58] sm:$0xf]
        %v307 = vld [vmem:[%s187 + $0x5c] sm:$0xf]
        %v308 = vld [vmem:[%s187 + $0x60] sm:$0xf]
        %v309 = vld [vmem:[%s187 + $0x64] sm:$0xf]
        %v310 = vld [vmem:[%s187 + $0x68] sm:$0xf]
        %v311 = vld [vmem:[%s187 + $0x6c] sm:$0xf]
        %v312 = vld [vmem:[%s187 + $0x70] sm:$0xf]
        %v313 = vld [vmem:[%s187 + $0x74] sm:$0xf]
        %v314 = vld [vmem:[%s187 + $0x78] sm:$0xf]
        %v315 = vld [vmem:[%s187 + $0x7c] sm:$0xf]
        %v316 = vld [vmem:[#allocation6] sm:$0xf]
        %v317 = vld [vmem:[#allocation6 + $0x4] sm:$0xf]
        %v318 = vld [vmem:[#allocation6 + $0x8] sm:$0xf]
        %v319 = vld [vmem:[#allocation6 + $0xc] sm:$0xf]
        %v320 = vld [vmem:[#allocation6 + $0x10] sm:$0xf]
        %v321 = vld [vmem:[#allocation6 + $0x14] sm:$0xf]
        %v322 = vld [vmem:[#allocation6 + $0x18] sm:$0xf]
        %v323 = vld [vmem:[#allocation6 + $0x1c] sm:$0xf]
        %v324 = vld [vmem:[#allocation6 + $0x20] sm:$0xf]
        %v325 = vld [vmem:[#allocation6 + $0x24] sm:$0xf]
        %v326 = vld [vmem:[#allocation6 + $0x28] sm:$0xf]
        %v327 = vld [vmem:[#allocation6 + $0x2c] sm:$0xf]
        %v328 = vld [vmem:[#allocation6 + $0x30] sm:$0xf]
        %v329 = vld [vmem:[#allocation6 + $0x34] sm:$0xf]
        %v330 = vld [vmem:[#allocation6 + $0x38] sm:$0xf]
        %v331 = vld [vmem:[#allocation6 + $0x3c] sm:$0xf]
        %v364 = vunpack.c.l.b16 %v284
        %v365 = vunpack.c.l.b16 %v285
        %v366 = vunpack.c.l.b16 %v286
        %v367 = vunpack.c.l.b16 %v287
        %v368 = vunpack.c.l.b16 %v288
        %v369 = vunpack.c.l.b16 %v289
        %v370 = vunpack.c.l.b16 %v290
        %v371 = vunpack.c.l.b16 %v291
        %v372 = vunpack.c.l.b16 %v292
        %v373 = vunpack.c.l.b16 %v293
        %v374 = vunpack.c.l.b16 %v294
        %v375 = vunpack.c.l.b16 %v295
        %v376 = vunpack.c.l.b16 %v296
        %v377 = vunpack.c.l.b16 %v297
        %v378 = vunpack.c.l.b16 %v298
        %v379 = vunpack.c.l.b16 %v299
        %v380 = vunpack.c.l.b16 %v300
        %v381 = vunpack.c.l.b16 %v301
        %v382 = vunpack.c.l.b16 %v302
        %v383 = vunpack.c.l.b16 %v303
        %v384 = vunpack.c.l.b16 %v304
        %v385 = vunpack.c.l.b16 %v305
        %v386 = vunpack.c.l.b16 %v306
        %v387 = vunpack.c.l.b16 %v307
        %v388 = vunpack.c.l.b16 %v308
        %v389 = vunpack.c.l.b16 %v309
        %v390 = vunpack.c.l.b16 %v310
        %v391 = vunpack.c.l.b16 %v311
        %v392 = vunpack.c.l.b16 %v312
        %v393 = vunpack.c.l.b16 %v313
        %v394 = vunpack.c.l.b16 %v314
        %v395 = vunpack.c.l.b16 %v315
        %v396 = vpack.c.b16 %v365, %v364
        %v397 = vpack.c.b16 %v367, %v366
        %v398 = vpack.c.b16 %v369, %v368
        %v399 = vpack.c.b16 %v371, %v370
        %v400 = vpack.c.b16 %v373, %v372
        %v401 = vpack.c.b16 %v375, %v374
        %v402 = vpack.c.b16 %v377, %v376
        %v403 = vpack.c.b16 %v379, %v378
        %v404 = vpack.c.b16 %v381, %v380
        %v405 = vpack.c.b16 %v383, %v382
        %v406 = vpack.c.b16 %v385, %v384
        %v407 = vpack.c.b16 %v387, %v386
        %v408 = vpack.c.b16 %v389, %v388
        %v409 = vpack.c.b16 %v391, %v390
        %v410 = vpack.c.b16 %v393, %v392
        %v411 = vpack.c.b16 %v395, %v394
        %v444 = vunpack.c.l.b16 %v316
        %v445 = vunpack.c.l.b16 %v317
        %v446 = vunpack.c.l.b16 %v318
        %v447 = vunpack.c.l.b16 %v319
        %v448 = vunpack.c.l.b16 %v320
        %v449 = vunpack.c.l.b16 %v321
        %v450 = vunpack.c.l.b16 %v322
        %v451 = vunpack.c.l.b16 %v323
        %v452 = vunpack.c.l.b16 %v324
        %v453 = vunpack.c.l.b16 %v325
        %v454 = vunpack.c.l.b16 %v326
        %v455 = vunpack.c.l.b16 %v327
        %v456 = vunpack.c.l.b16 %v328
        %v457 = vunpack.c.l.b16 %v329
        %v458 = vunpack.c.l.b16 %v330
        %v459 = vunpack.c.l.b16 %v331
        %v460 = vpack.c.b16 %v445, %v444
        %v461 = vpack.c.b16 %v447, %v446
        %v462 = vpack.c.b16 %v449, %v448
        %v463 = vpack.c.b16 %v451, %v450
        %v464 = vpack.c.b16 %v453, %v452
        %v465 = vpack.c.b16 %v455, %v454
        %v466 = vpack.c.b16 %v457, %v456
        %v467 = vpack.c.b16 %v459, %v458
        %476 = vmatprep.subr.bf16.mxu0 0
        %477 = vmatpush1.bf16.msra.mxu0 %v460
        %478 = vmatprep.subr.bf16.mxu0 0
        %479 = vmatpush1.bf16.msra.mxu0 %v461
        %480 = vmatprep.subr.bf16.mxu0 0
        %481 = vmatpush1.bf16.msra.mxu0 %v462
        %482 = vmatprep.subr.bf16.mxu0 0
        %483 = vmatpush1.bf16.msra.mxu0 %v463
        %484 = vmatprep.subr.bf16.mxu0 0
        %485 = vmatpush1.bf16.msra.mxu0 %v464
        %486 = vmatprep.subr.bf16.mxu0 0
        %487 = vmatpush1.bf16.msra.mxu0 %v465
        %488 = vmatprep.subr.bf16.mxu0 0
        %489 = vmatpush1.bf16.msra.mxu0 %v466
        %490 = vmatprep.subr.bf16.mxu0 0
        %491 = vmatpush1.bf16.msra.mxu0 %v467
        %492 = vmatprep.subr.bf16.mxu0 0
        %493 = vmatpush1.bf16.msra.mxu0 0
        %494 = vmatprep.subr.bf16.mxu0 0
        %495 = vmatpush1.bf16.msra.mxu0 0
        %496 = vmatprep.subr.bf16.mxu0 0
        %497 = vmatpush1.bf16.msra.mxu0 0
        %498 = vmatprep.subr.bf16.mxu0 0
        %499 = vmatpush1.bf16.msra.mxu0 0
        %500 = vmatprep.subr.bf16.mxu0 0
        %501 = vmatpush1.bf16.msra.mxu0 0
        %502 = vmatprep.subr.bf16.mxu0 0
        %503 = vmatpush1.bf16.msra.mxu0 0
        %504 = vmatprep.subr.bf16.mxu0 0
        %505 = vmatpush1.bf16.msra.mxu0 0
        %506 = vmatprep.subr.bf16.mxu0 0
        %507 = vmatpush1.bf16.msra.mxu0 0
        %508 = vmatprep.mubr.bf16.mxu0 0
        %509 = vmatmul.mubr.bf16.gmra.mrb[0].mxu0 %v396
        %v510 = vpop.f32.mrb[0].mxu0
        %v511 = vadd.f32 0.0, %v510
        %v512 = vpop.f32.mrb[0].mxu0
        %v513 = vpop.f32.mrb[0].mxu0
        %v514 = vadd.f32 0.0, %v513
        %v515 = vpop.f32.mrb[0].mxu0
        %516 = vmatprep.mubr.bf16.mxu0 0
        %517 = vmatmul.mubr.bf16.gmra.mrb[0].mxu0 %v397
        %v518 = vpop.f32.mrb[0].mxu0
        %v519 = vadd.f32 0.0, %v518
        %v520 = vpop.f32.mrb[0].mxu0
        %v521 = vpop.f32.mrb[0].mxu0
        %v522 = vadd.f32 0.0, %v521
        %v523 = vpop.f32.mrb[0].mxu0
        %524 = vmatprep.mubr.bf16.mxu0 0
        %525 = vmatmul.mubr.bf16.gmra.mrb[0].mxu0 %v398
        %v526 = vpop.f32.mrb[0].mxu0
        %v527 = vadd.f32 0.0, %v526
        %v528 = vpop.f32.mrb[0].mxu0
        %v529 = vpop.f32.mrb[0].mxu0
        %v530 = vadd.f32 0.0, %v529
        %v531 = vpop.f32.mrb[0].mxu0
        %532 = vmatprep.mubr.bf16.mxu0 0
        %533 = vmatmul.mubr.bf16.gmra.mrb[0].mxu0 %v399
        %v534 = vpop.f32.mrb[0].mxu0
        %v535 = vadd.f32 0.0, %v534
        %v536 = vpop.f32.mrb[0].mxu0
        %v537 = vpop.f32.mrb[0].mxu0
        %v538 = vadd.f32 0.0, %v537
        %v539 = vpop.f32.mrb[0].mxu0
        %540 = vmatprep.mubr.bf16.mxu0 0
        %541 = vmatmul.mubr.bf16.gmra.mrb[0].mxu0 %v400
        %v542 = vpop.f32.mrb[0].mxu0
        %v543 = vadd.f32 0.0, %v542
        %v544 = vpop.f32.mrb[0].mxu0
        %v545 = vpop.f32.mrb[0].mxu0
        %v546 = vadd.f32 0.0, %v545
        %v547 = vpop.f32.mrb[0].mxu0
        %548 = vmatprep.mubr.bf16.mxu0 0
        %549 = vmatmul.mubr.bf16.gmra.mrb[0].mxu0 %v401
        %v550 = vpop.f32.mrb[0].mxu0
        %v551 = vadd.f32 0.0, %v550
        %v552 = vpop.f32.mrb[0].mxu0
        %v553 = vpop.f32.mrb[0].mxu0
        %v554 = vadd.f32 0.0, %v553
        %v555 = vpop.f32.mrb[0].mxu0
        %556 = vmatprep.mubr.bf16.mxu0 0
        %557 = vmatmul.mubr.bf16.gmra.mrb[0].mxu0 %v402
        %v558 = vpop.f32.mrb[0].mxu0
        %v559 = vadd.f32 0.0, %v558
        %v560 = vpop.f32.mrb[0].mxu0
        %v561 = vpop.f32.mrb[0].mxu0
        %v562 = vadd.f32 0.0, %v561
        %v563 = vpop.f32.mrb[0].mxu0
        %564 = vmatprep.mubr.bf16.mxu0 0
        %565 = vmatmul.mubr.bf16.gmra.mrb[0].mxu0 %v403
        %v566 = vpop.f32.mrb[0].mxu0
        %v567 = vadd.f32 0.0, %v566
        %v568 = vpop.f32.mrb[0].mxu0
        %v569 = vpop.f32.mrb[0].mxu0
        %v570 = vadd.f32 0.0, %v569
        %v571 = vpop.f32.mrb[0].mxu0
        %572 = vmatprep.mubr.bf16.mxu0 0
        %573 = vmatmul.mubr.bf16.gmra.mrb[0].mxu0 %v404
        %v574 = vpop.f32.mrb[0].mxu0
        %v575 = vadd.f32 0.0, %v574
        %v576 = vpop.f32.mrb[0].mxu0
        %v577 = vpop.f32.mrb[0].mxu0
        %v578 = vadd.f32 0.0, %v577
        %v579 = vpop.f32.mrb[0].mxu0
        %580 = vmatprep.mubr.bf16.mxu0 0
        %581 = vmatmul.mubr.bf16.gmra.mrb[0].mxu0 %v405
        %v582 = vpop.f32.mrb[0].mxu0
        %v583 = vadd.f32 0.0, %v582
        %v584 = vpop.f32.mrb[0].mxu0
        %v585 = vpop.f32.mrb[0].mxu0
        %v586 = vadd.f32 0.0, %v585
        %v587 = vpop.f32.mrb[0].mxu0
        %588 = vmatprep.mubr.bf16.mxu0 0
        %589 = vmatmul.mubr.bf16.gmra.mrb[0].mxu0 %v406
        %v590 = vpop.f32.mrb[0].mxu0
        %v591 = vadd.f32 0.0, %v590
        %v592 = vpop.f32.mrb[0].mxu0
        %v593 = vpop.f32.mrb[0].mxu0
        %v594 = vadd.f32 0.0, %v593
        %v595 = vpop.f32.mrb[0].mxu0
        %596 = vmatprep.mubr.bf16.mxu0 0
        %597 = vmatmul.mubr.bf16.gmra.mrb[0].mxu0 %v407
        %v598 = vpop.f32.mrb[0].mxu0
        %v599 = vadd.f32 0.0, %v598
        %v600 = vpop.f32.mrb[0].mxu0
        %v601 = vpop.f32.mrb[0].mxu0
        %v602 = vadd.f32 0.0, %v601
        %v603 = vpop.f32.mrb[0].mxu0
        %604 = vmatprep.mubr.bf16.mxu0 0
        %605 = vmatmul.mubr.bf16.gmra.mrb[0].mxu0 %v408
        %v606 = vpop.f32.mrb[0].mxu0
        %v607 = vadd.f32 0.0, %v606
        %v608 = vpop.f32.mrb[0].mxu0
        %v609 = vpop.f32.mrb[0].mxu0
        %v610 = vadd.f32 0.0, %v609
        %v611 = vpop.f32.mrb[0].mxu0
        %612 = vmatprep.mubr.bf16.mxu0 0
        %613 = vmatmul.mubr.bf16.gmra.mrb[0].mxu0 %v409
        %v614 = vpop.f32.mrb[0].mxu0
        %v615 = vadd.f32 0.0, %v614
        %v616 = vpop.f32.mrb[0].mxu0
        %v617 = vpop.f32.mrb[0].mxu0
        %v618 = vadd.f32 0.0, %v617
        %v619 = vpop.f32.mrb[0].mxu0
        %620 = vmatprep.mubr.bf16.mxu0 0
        %621 = vmatmul.mubr.bf16.gmra.mrb[0].mxu0 %v410
        %v622 = vpop.f32.mrb[0].mxu0
        %v623 = vadd.f32 0.0, %v622
        %v624 = vpop.f32.mrb[0].mxu0
        %v625 = vpop.f32.mrb[0].mxu0
        %v626 = vadd.f32 0.0, %v625
        %v627 = vpop.f32.mrb[0].mxu0
        %628 = vmatprep.mubr.bf16.mxu0 0
        %629 = vmatmul.mubr.bf16.gmra.mrb[0].mxu0 %v411
        %v630 = vpop.f32.mrb[0].mxu0
        %v631 = vadd.f32 0.0, %v630
        %v632 = vpop.f32.mrb[0].mxu0
        %v633 = vpop.f32.mrb[0].mxu0
        %v634 = vadd.f32 0.0, %v633
        %v635 = vpop.f32.mrb[0].mxu0
        %636 = vdwg.mxu0
        %v637 = vadd.f32 %v252, %v511
        %v638 = vadd.f32 %v253, %v514
        %v639 = vadd.f32 %v254, %v519
        %v640 = vadd.f32 %v255, %v522
        %v641 = vadd.f32 %v256, %v527
        %v642 = vadd.f32 %v257, %v530
        %v643 = vadd.f32 %v258, %v535
        %v644 = vadd.f32 %v259, %v538
        %v645 = vadd.f32 %v260, %v543
        %v646 = vadd.f32 %v261, %v546
        %v647 = vadd.f32 %v262, %v551
        %v648 = vadd.f32 %v263, %v554
        %v649 = vadd.f32 %v264, %v559
        %v650 = vadd.f32 %v265, %v562
        %v651 = vadd.f32 %v266, %v567
        %v652 = vadd.f32 %v267, %v570
        %v653 = vadd.f32 %v268, %v575
        %v654 = vadd.f32 %v269, %v578
        %v655 = vadd.f32 %v270, %v583
        %v656 = vadd.f32 %v271, %v586
        %v657 = vadd.f32 %v272, %v591
        %v658 = vadd.f32 %v273, %v594
        %v659 = vadd.f32 %v274, %v599
        %v660 = vadd.f32 %v275, %v602
        %v661 = vadd.f32 %v276, %v607
        %v662 = vadd.f32 %v277, %v610
        %v663 = vadd.f32 %v278, %v615
        %v664 = vadd.f32 %v279, %v618
        %v665 = vadd.f32 %v280, %v623
        %v666 = vadd.f32 %v281, %v626
        %v667 = vadd.f32 %v282, %v631
        %v668 = vadd.f32 %v283, %v634
        %669 = vst [vmem:[#allocation2] sm:$0xff] %v637
        %670 = vst [vmem:[#allocation2 + $0x8] sm:$0xff] %v638
        %671 = vst [vmem:[#allocation2 + $0x10] sm:$0xff] %v639
        %672 = vst [vmem:[#allocation2 + $0x18] sm:$0xff] %v640
        %673 = vst [vmem:[#allocation2 + $0x20] sm:$0xff] %v641
        %674 = vst [vmem:[#allocation2 + $0x28] sm:$0xff] %v642
        %675 = vst [vmem:[#allocation2 + $0x30] sm:$0xff] %v643
        %676 = vst [vmem:[#allocation2 + $0x38] sm:$0xff] %v644
        %677 = vst [vmem:[#allocation2 + $0x40] sm:$0xff] %v645
        %678 = vst [vmem:[#allocation2 + $0x48] sm:$0xff] %v646
        %679 = vst [vmem:[#allocation2 + $0x50] sm:$0xff] %v647
        %680 = vst [vmem:[#allocation2 + $0x58] sm:$0xff] %v648
        %681 = vst [vmem:[#allocation2 + $0x60] sm:$0xff] %v649
        %682 = vst [vmem:[#allocation2 + $0x68] sm:$0xff] %v650
        %683 = vst [vmem:[#allocation2 + $0x70] sm:$0xff] %v651
        %684 = vst [vmem:[#allocation2 + $0x78] sm:$0xff] %v652
        %685 = vst [vmem:[#allocation2 + $0x80] sm:$0xff] %v653
        %686 = vst [vmem:[#allocation2 + $0x88] sm:$0xff] %v654
        %687 = vst [vmem:[#allocation2 + $0x90] sm:$0xff] %v655
        %688 = vst [vmem:[#allocation2 + $0x98] sm:$0xff] %v656
        %689 = vst [vmem:[#allocation2 + $0xa0] sm:$0xff] %v657
        %690 = vst [vmem:[#allocation2 + $0xa8] sm:$0xff] %v658
        %691 = vst [vmem:[#allocation2 + $0xb0] sm:$0xff] %v659
        %692 = vst [vmem:[#allocation2 + $0xb8] sm:$0xff] %v660
        %693 = vst [vmem:[#allocation2 + $0xc0] sm:$0xff] %v661
        %694 = vst [vmem:[#allocation2 + $0xc8] sm:$0xff] %v662
        %695 = vst [vmem:[#allocation2 + $0xd0] sm:$0xff] %v663
        %696 = vst [vmem:[#allocation2 + $0xd8] sm:$0xff] %v664
        %697 = vst [vmem:[#allocation2 + $0xe0] sm:$0xff] %v665
        %698 = vst [vmem:[#allocation2 + $0xe8] sm:$0xff] %v666
        %699 = vst [vmem:[#allocation2 + $0xf0] sm:$0xff] %v667
        %700 = vst [vmem:[#allocation2 + $0xf8] sm:$0xff] %v668
        // Predicated region
        $region41: #{tpu_custom_call.1} parent=27 // pred_check
          %p701 = pneg %p216
        $region42: #{tpu_custom_call.1} parent=27 // pred_check_branch
          %703 = sbr.rel (%p701) target = $region44
        $region43: #{tpu_custom_call.1} parent=27 // pred_region
          %v704 = vld [vmem:[#allocation2] sm:$0xff]
          %v705 = vld [vmem:[#allocation2 + $0x8] sm:$0xff]
          %v706 = vld [vmem:[#allocation2 + $0x10] sm:$0xff]
          %v707 = vld [vmem:[#allocation2 + $0x18] sm:$0xff]
          %v708 = vld [vmem:[#allocation2 + $0x20] sm:$0xff]
          %v709 = vld [vmem:[#allocation2 + $0x28] sm:$0xff]
          %v710 = vld [vmem:[#allocation2 + $0x30] sm:$0xff]
          %v711 = vld [vmem:[#allocation2 + $0x38] sm:$0xff]
          %v712 = vld [vmem:[#allocation2 + $0x40] sm:$0xff]
          %v713 = vld [vmem:[#allocation2 + $0x48] sm:$0xff]
          %v714 = vld [vmem:[#allocation2 + $0x50] sm:$0xff]
          %v715 = vld [vmem:[#allocation2 + $0x58] sm:$0xff]
          %v716 = vld [vmem:[#allocation2 + $0x60] sm:$0xff]
          %v717 = vld [vmem:[#allocation2 + $0x68] sm:$0xff]
          %v718 = vld [vmem:[#allocation2 + $0x70] sm:$0xff]
          %v719 = vld [vmem:[#allocation2 + $0x78] sm:$0xff]
          %v720 = vld [vmem:[#allocation2 + $0x80] sm:$0xff]
          %v721 = vld [vmem:[#allocation2 + $0x88] sm:$0xff]
          %v722 = vld [vmem:[#allocation2 + $0x90] sm:$0xff]
          %v723 = vld [vmem:[#allocation2 + $0x98] sm:$0xff]
          %v724 = vld [vmem:[#allocation2 + $0xa0] sm:$0xff]
          %v725 = vld [vmem:[#allocation2 + $0xa8] sm:$0xff]
          %v726 = vld [vmem:[#allocation2 + $0xb0] sm:$0xff]
          %v727 = vld [vmem:[#allocation2 + $0xb8] sm:$0xff]
          %v728 = vld [vmem:[#allocation2 + $0xc0] sm:$0xff]
          %v729 = vld [vmem:[#allocation2 + $0xc8] sm:$0xff]
          %v730 = vld [vmem:[#allocation2 + $0xd0] sm:$0xff]
          %v731 = vld [vmem:[#allocation2 + $0xd8] sm:$0xff]
          %v732 = vld [vmem:[#allocation2 + $0xe0] sm:$0xff]
          %v733 = vld [vmem:[#allocation2 + $0xe8] sm:$0xff]
          %v734 = vld [vmem:[#allocation2 + $0xf0] sm:$0xff]
          %v735 = vld [vmem:[#allocation2 + $0xf8] sm:$0xff]
          %736 = vst [vmem:[%s211] sm:$0xff] %v704
          %737 = vst [vmem:[%s211 + $0x8] sm:$0xff] %v705
          %738 = vst [vmem:[%s211 + $0x10] sm:$0xff] %v706
          %739 = vst [vmem:[%s211 + $0x18] sm:$0xff] %v707
          %740 = vst [vmem:[%s211 + $0x20] sm:$0xff] %v708
          %741 = vst [vmem:[%s211 + $0x28] sm:$0xff] %v709
          %742 = vst [vmem:[%s211 + $0x30] sm:$0xff] %v710
          %743 = vst [vmem:[%s211 + $0x38] sm:$0xff] %v711
          %744 = vst [vmem:[%s211 + $0x40] sm:$0xff] %v712
          %745 = vst [vmem:[%s211 + $0x48] sm:$0xff] %v713
          %746 = vst [vmem:[%s211 + $0x50] sm:$0xff] %v714
          %747 = vst [vmem:[%s211 + $0x58] sm:$0xff] %v715
          %748 = vst [vmem:[%s211 + $0x60] sm:$0xff] %v716
          %749 = vst [vmem:[%s211 + $0x68] sm:$0xff] %v717
          %750 = vst [vmem:[%s211 + $0x70] sm:$0xff] %v718
          %751 = vst [vmem:[%s211 + $0x78] sm:$0xff] %v719
          %752 = vst [vmem:[%s211 + $0x80] sm:$0xff] %v720
          %753 = vst [vmem:[%s211 + $0x88] sm:$0xff] %v721
          %754 = vst [vmem:[%s211 + $0x90] sm:$0xff] %v722
          %755 = vst [vmem:[%s211 + $0x98] sm:$0xff] %v723
          %756 = vst [vmem:[%s211 + $0xa0] sm:$0xff] %v724
          %757 = vst [vmem:[%s211 + $0xa8] sm:$0xff] %v725
          %758 = vst [vmem:[%s211 + $0xb0] sm:$0xff] %v726
          %759 = vst [vmem:[%s211 + $0xb8] sm:$0xff] %v727
          %760 = vst [vmem:[%s211 + $0xc0] sm:$0xff] %v728
          %761 = vst [vmem:[%s211 + $0xc8] sm:$0xff] %v729
          %762 = vst [vmem:[%s211 + $0xd0] sm:$0xff] %v730
          %763 = vst [vmem:[%s211 + $0xd8] sm:$0xff] %v731
          %764 = vst [vmem:[%s211 + $0xe0] sm:$0xff] %v732
          %765 = vst [vmem:[%s211 + $0xe8] sm:$0xff] %v733
          %766 = vst [vmem:[%s211 + $0xf0] sm:$0xff] %v734
          %767 = vst [vmem:[%s211 + $0xf8] sm:$0xff] %v735
        $region44: #{tpu_custom_call.1} parent=27 // pred_fallthru
          _
        %s768 = sand.u32 %s105, 1
        %s769 = scalar_lea.sflag [#allocation5], %s768
        %s770 = sand.u32 %s105, 1
        %s771 = smul.addr %s770, 256
        %s772 = scalar_lea.vmem [#allocation8], %s771
        // Predicated region
        $region45: #{tpu_custom_call.1} parent=27 // pred_check
          %p773 = pneg %p115
        $region46: #{tpu_custom_call.1} parent=27 // pred_check_branch
          %775 = sbr.rel (%p773) target = $region48
        $region47: #{tpu_custom_call.1} parent=27 // pred_region
          %s776 = smul.u32 32, %s25
          %s778 = ssub.s32 4096, 4096
          %779 = vsyncadd %s769, %s778
          %s780 = sadd.s32 %s26, %s776
          %s781 = smul.addr %s780, 128
          %s782 = scalar_lea.hbm %s2, %s781
          %s783 = sshll.u32 %s772, 4
          %s784 = int_to_ptr.vmem [resolvable:$true] %s783
          %789 = dma.vmem_to_hbm [thread:$0]  %s784, 4096, %s782, %s769, 128, 128, 8
        $region48: #{tpu_custom_call.1} parent=27 // pred_fallthru
          _
      $region28: #{tpu_custom_call.1} parent=5 // pred_fallthru
        _
      %p790 = scmp.le.s32.totalorder 2, %s15
      // Predicated region
      $region49: #{tpu_custom_call.1} parent=5 // pred_check
        %p791 = pneg %p790
      $region50: #{tpu_custom_call.1} parent=5 // pred_check_branch
        %793 = sbr.rel (%p791) target = $region52
      $region51: #{tpu_custom_call.1} parent=5 // pred_region
        %s794 = ssub.s32 %s15, 2
        // Predicated region
        $region53: #{tpu_custom_call.1} parent=51 // pred_check
          %p795 = pneg %p121
        $region54: #{tpu_custom_call.1} parent=51 // pred_check_branch
          %797 = sbr.rel (%p795) target = $region56
        $region55: #{tpu_custom_call.1} parent=51 // pred_region
          %s798 = sand.u32 %s106, 1
          %s799 = scalar_lea.sflag [#allocation5], %s798
          %s800 = sand.u32 %s106, 1
          %s801 = smul.addr %s800, 256
          %s802 = scalar_lea.vmem [#allocation8], %s801
          %803 = dma.done %s799, 4096
        $region56: #{tpu_custom_call.1} parent=51 // pred_fallthru
          _
      $region52: #{tpu_custom_call.1} parent=5 // pred_fallthru
        _
    $region6: #{tpu_custom_call.1} parent=1 // loop_footer
      %s19 = sadd.s32 1, %s15
    $region7: #{tpu_custom_call.1} parent=1 // loop_footer_branch
      %14 = sbr.rel target = $region3
    $region8: #{tpu_custom_call.1} parent=1 // loop_exit
      _
    %804 = vsyncpa [#allocation4], 1
    %s805 = scalar_lea.sflag [#allocation4], 1
    %806 = vsyncpa %s805, 1
    %807 = vsyncpa [#allocation7], 1
    %808 = vsyncpa [#allocation5], 1
    %s809 = scalar_lea.sflag [#allocation5], 1
    %810 = vsyncpa %s809, 1

</llo_original>
